<compile_context>
chip_gen: v7x
topology: tpu7x:2x2x1
jax: 0.10.0
libtpu: 0.0.40
codegen_flags: <defaults>
</compile_context>

<pallas_src>
import functools
import math

import jax
import jax.numpy as jnp
from jax import lax
from jax.experimental import pallas as pl
from jax.experimental.pallas import tpu as pltpu


def _round_up(x: int, m: int) -> int:
    return ((x + m - 1) // m) * m


def _embed_gather_kernel(ids_ref, emb_hbm, out_ref, row_buf, sem, *,
                         token_tile: int, scale: float):
    # ids_ref : SMEM (n_tokens_pad,) int32      -- scalar-prefetched token ids
    # emb_hbm : ANY  (vocab, d_pad)   table dt  -- embedding table, left in HBM
    # out_ref : VMEM (token_tile, d_pad) f32    -- output tile
    # row_buf : VMEM (token_tile, d_pad) table dt -- DMA landing buffer
    # sem     : single DMA semaphore shared by all row copies
    base = pl.multiple_of(pl.program_id(0) * token_tile, token_tile)

    # Issue one row DMA per token in the tile (all concurrent, one semaphore).
    def issue(t, carry):
        tok = ids_ref[base + t]
        pltpu.make_async_copy(emb_hbm.at[tok], row_buf.at[t], sem).start()
        return carry

    lax.fori_loop(0, token_tile, issue, 0)

    # Drain: every copy has identical shape, so wait token_tile times with a
    # same-shaped descriptor on the shared semaphore.
    def drain(t, carry):
        pltpu.make_async_copy(emb_hbm.at[0], row_buf.at[0], sem).wait()
        return carry

    lax.fori_loop(0, token_tile, drain, 0)

    # Fused sqrt(d_model) scale + cast, lane-dense store of the whole tile.
    out_ref[...] = (row_buf[...].astype(jnp.float32)
                    * jnp.float32(scale)).astype(out_ref.dtype)


def input_embedding(input_ids: jax.Array,
                    embedding_table: jax.Array,
                    *,
                    token_tile: int = 256) -> jax.Array:
    """input_ids: (B, S) int; embedding_table: (V, D) -> (B, S, D) float32."""
    batch, seq = input_ids.shape
    vocab_size, d_model = embedding_table.shape
    n_tokens = batch * seq
    out_dtype = jnp.float32

    # Lane-dense output: pad d_model up to a multiple of 128 (no-op for real
    # model widths like 512/1024/4096).
    d_pad = _round_up(d_model, 128)
    if d_pad != d_model:
        embedding_table = jnp.pad(embedding_table,
                                  ((0, 0), (0, d_pad - d_model)))

    # Token tile: multiple of 8 sublanes, capped at the (padded) token count.
    tile = _round_up(min(token_tile, _round_up(n_tokens, 8)), 8)
    n_pad = _round_up(n_tokens, tile)

    ids_flat = input_ids.reshape(-1).astype(jnp.int32)
    # Clamp so padded / out-of-range ids can never trigger an OOB DMA
    # (nn.Embedding would raise; here we deliberately stay safe instead).
    ids_flat = jnp.clip(ids_flat, 0, vocab_size - 1)
    if n_pad != n_tokens:
        ids_flat = jnp.pad(ids_flat, (0, n_pad - n_tokens))
    # NOTE: ids live in SMEM; for extremely long sequences tile the id array too.

    grid = (n_pad // tile,)
    scale = math.sqrt(d_model)

    emb_itemsize = jnp.dtype(embedding_table.dtype).itemsize
    out_itemsize = jnp.dtype(out_dtype).itemsize
    vmem_needed = (2 * tile * d_pad * out_itemsize     # double-buffered out block
                   + tile * d_pad * emb_itemsize       # DMA landing scratch
                   + (4 << 20))                        # headroom
    vmem_limit = int(min(max(vmem_needed, 32 << 20), 64 << 20))  # v7x-safe cap

    kernel = functools.partial(_embed_gather_kernel,
                               token_tile=tile, scale=scale)

    out_flat = pl.pallas_call(
        kernel,
        out_shape=jax.ShapeDtypeStruct((n_pad, d_pad), out_dtype),
        grid_spec=pltpu.PrefetchScalarGridSpec(
            num_scalar_prefetch=1,                       # ids -> SMEM
            grid=grid,
            in_specs=[pl.BlockSpec(memory_space=pl.ANY)],  # table stays in HBM
            out_specs=pl.BlockSpec((tile, d_pad), lambda i, ids: (i, 0)),
            scratch_shapes=[
                pltpu.VMEM((tile, d_pad), embedding_table.dtype),
                pltpu.SemaphoreType.DMA,
            ],
        ),
        compiler_params=pltpu.CompilerParams(
            dimension_semantics=("parallel",),
            vmem_limit_bytes=vmem_limit,
        ),
    )(ids_flat, embedding_table)

    return out_flat[:n_tokens, :d_model].reshape(batch, seq, d_model)


if __name__ == "__main__":
    d_model = 32
    vocab_size = 64
    batch, seq = 2, 8

    key = jax.random.PRNGKey(0)
    k_emb, k_ids = jax.random.split(key)

    # Deterministic synthetic parameters (nn.Embedding weight ~ N(0, 1)).
    embedding_table = jax.random.normal(k_emb, (vocab_size, d_model),
                                        dtype=jnp.float32)
    input_ids = jax.random.randint(k_ids, (batch, seq), 0, vocab_size,
                                   dtype=jnp.int32)

    out = input_embedding(input_ids, embedding_table)
    out = jax.block_until_ready(out)

    # Reference check (plain JAX): embedding lookup * sqrt(d_model).
    ref = embedding_table[input_ids] * math.sqrt(d_model)
    assert out.shape == (batch, seq, d_model)
    assert jnp.allclose(out, ref, atol=1e-5, rtol=1e-5)

    print("KERNEL_OK")
</pallas_src>

<mosaic_0001>
module attributes {stable_mosaic.version = 11 : i64} {
  func.func @_embed_gather_kernel(%arg0: i32, %arg1: memref<16xi32, #tpu.memory_space<smem>>, %arg2: memref<64x128xf32, #tpu.memory_space<any>>, %arg3: memref<16x128xf32, #tpu.memory_space<vmem>>, %arg4: memref<16x128xf32, #tpu.memory_space<vmem>>, %arg5: memref<!tpu.dma_semaphore, #tpu.memory_space<semaphore_mem>>) attributes {dimension_semantics = [#tpu.dimension_semantics<parallel>], iteration_bounds = array<i64: 1>, scalar_prefetch = 1 : i64, scratch_operands = 2 : i64, tpu.core_type = #tpu.core_type<tc>, window_params = [{}, {transform_indices = @transform_1, window_bounds = array<i64: 16, 128>}]} {
    %c16_i32 = arith.constant 16 : i32
    %0 = arith.muli %arg0, %c16_i32 : i32
    %1 = tpu.assume_multiple %0, 16 : i32
    %c0_i32 = arith.constant 0 : i32
    %c16_i32_0 = arith.constant 16 : i32
    %2 = arith.addi %c0_i32, %c16_i32_0 : i32
    %c1_i32 = arith.constant 1 : i32
    scf.for %arg6 = %c0_i32 to %2 step %c1_i32  : i32 {
      %8 = arith.addi %1, %arg6 : i32
      %9 = arith.index_cast %8 : i32 to index
      %10 = memref.load %arg1[%9] : memref<16xi32, #tpu.memory_space<smem>>
      %c0_i32_8 = arith.constant 0 : i32
      %11 = tpu.memref_slice %arg2[%10, %c0_i32_8] : memref<64x128xf32, #tpu.memory_space<any>> -> memref<1x128xf32, #tpu.memory_space<any>>
      %12 = tpu.memref_squeeze %11 : memref<1x128xf32, #tpu.memory_space<any>> -> memref<128xf32, #tpu.memory_space<any>>
      %c0_i32_9 = arith.constant 0 : i32
      %13 = tpu.memref_slice %arg4[%arg6, %c0_i32_9] : memref<16x128xf32, #tpu.memory_space<vmem>> -> memref<1x128xf32, #tpu.memory_space<vmem>>
      %14 = tpu.memref_squeeze %13 : memref<1x128xf32, #tpu.memory_space<vmem>> -> memref<128xf32, #tpu.memory_space<vmem>>
      tpu.enqueue_dma source(%12 : memref<128xf32, #tpu.memory_space<any>>) target(%14 : memref<128xf32, #tpu.memory_space<vmem>>) target_semaphore(%arg5 : memref<!tpu.dma_semaphore, #tpu.memory_space<semaphore_mem>>)
    }
    %c16_i32_1 = arith.constant 16 : i32
    %c0_i32_2 = arith.constant 0 : i32
    %c16_i32_3 = arith.constant 16 : i32
    %3 = arith.addi %c0_i32_2, %c16_i32_3 : i32
    %c1_i32_4 = arith.constant 1 : i32
    scf.for %arg6 = %c0_i32_2 to %3 step %c1_i32_4  : i32 {
      %c0_i32_8 = arith.constant 0 : i32
      %c0_i32_9 = arith.constant 0 : i32
      %c0_i32_10 = arith.constant 0 : i32
      %8 = tpu.memref_slice %arg2[%c0_i32_8, %c0_i32_10] : memref<64x128xf32, #tpu.memory_space<any>> -> memref<1x128xf32, #tpu.memory_space<any>>
      %9 = tpu.memref_squeeze %8 : memref<1x128xf32, #tpu.memory_space<any>> -> memref<128xf32, #tpu.memory_space<any>>
      %c0_i32_11 = arith.constant 0 : i32
      %10 = tpu.memref_slice %arg4[%c0_i32_9, %c0_i32_11] : memref<16x128xf32, #tpu.memory_space<vmem>> -> memref<1x128xf32, #tpu.memory_space<vmem>>
      %11 = tpu.memref_squeeze %10 : memref<1x128xf32, #tpu.memory_space<vmem>> -> memref<128xf32, #tpu.memory_space<vmem>>
      tpu.wait_dma2 semaphore(%arg5 : memref<!tpu.dma_semaphore, #tpu.memory_space<semaphore_mem>>) src(%9 : memref<128xf32, #tpu.memory_space<any>>) dst(%11 : memref<128xf32, #tpu.memory_space<vmem>>)
    }
    %c0 = arith.constant 0 : index
    %c0_5 = arith.constant 0 : index
    %4 = vector.load %arg4[%c0, %c0_5] : memref<16x128xf32, #tpu.memory_space<vmem>>, vector<16x128xf32>
    %cst = arith.constant 5.65685415 : f32
    %5 = vector.broadcast %cst : f32 to vector<16x128xf32>
    %6 = arith.mulf %4, %5 : vector<16x128xf32>
    %c0_6 = arith.constant 0 : index
    %c0_7 = arith.constant 0 : index
    %7 = vector.load %arg3[%c0_6, %c0_7] : memref<16x128xf32, #tpu.memory_space<vmem>>, vector<16x128xf32>
    tpu.vector_store %arg3[%c0_6, %c0_7], %6 {strides = array<i32>} : memref<16x128xf32, #tpu.memory_space<vmem>>, vector<16x128xf32>,
    return
  }
  func.func @transform_1(%arg0: i32, %arg1: memref<16xi32, #tpu.memory_space<smem>>) -> (i32, i32) {
    %c0_i32 = arith.constant 0 : i32
    %c0_i32_0 = arith.constant 0 : i32
    return %arg0, %c0_i32 : i32, i32
  }
}

</mosaic_0001>

<llo_original>
// kernel: tpu_custom_call.1
$region0: #{tpu_custom_call.1}
  #allocation0 [shape = 'u32[]', space=smem, size = 0x4, offset = 0x4, fixed_abs, tag = 'smem constant byte address 0x4 - core index']
  #allocation1 [shape = 'u32[144,128]{1,0:T(1,128)}', space=vmem, size = 0x12000, scoped, tag = 'internal scratch']
  #allocation2 [shape = 'f32[16,128]{1,0:T(8,128)}', space=vmem, size = 0x2000, scoped, tag = 'scratch operand']
  #allocation3 [shape = 's32[1]{0}', space=sflag, size = 0x4, scoped, tag = 'scratch operand']
  #allocation4 [shape = 's32[1]{0}', space=sflag, size = 0x4, scoped, tag = 'scoped memory for tpu_custom_call.1']
  #allocation5 [shape = 'u8[512]{0}', space=smem, size = 0x200, scoped, tag = 'prefetched SMEM operand 0']
  #allocation8 [shape = 's32[]', space=sflag, size = 0x4, offset = 0, fixed_abs, tag = 'sflag constant byte address 0x0 - dummy sync flag']
  #allocation9 [shape = 's32[]', space=sflag, size = 0x4, offset = 0, fixed_abs, tag = 'sflag constant byte address 0x0 - dummy sync flag']
  #allocation10 [shape = 'u32[]', space=smem, size = 0x4, offset = 0x44, fixed_abs, tag = 'smem constant byte address 0x44 - assertion arg 0']
  #allocation11 [shape = 'u32[]', space=smem, size = 0x4, offset = 0x48, fixed_abs, tag = 'smem constant byte address 0x48 - assertion arg 1']
  %s0 = inlined_call_operand.hbm [shape: s32[16], index: 0, kind: input, shape index: {}]
  %s1 = inlined_call_operand.hbm [shape: f32[64,128], index: 1, kind: input, shape index: {}]
  %s2 = inlined_call_operand.hbm [shape: f32[16,128], index: 2, kind: output, shape index: {}]
  %s3 = sld [smem:[#allocation0]]
  $region28: #{tpu_custom_call.1} parent=0
    _
  %s5 = ssub.s32 1, %s3
  %s6 = scalar_select 0, %s5, %s3
  %8 = dma.hbm_to_smem %s0, 16, [#allocation5], [#allocation4]
  %9 = dma.done [#allocation4], 16
  %10 = sfence
  $region1: #{tpu_custom_call.1} parent=0
    #allocation6 [shape = 'u8[8192]{0}', space=vmem, size = 0x2000, scoped, tag = 'output window, operand 0, single buffered']
    #allocation7 [shape = 's32[1]{0}', space=sflag, size = 0x4, scoped, tag = 'scoped memory for tpu_custom_call.1']
    %11 = vsyncpa [#allocation7], 0
    %s12 = smul.u32 0, 16
    loop: start=0, step=1, limit=16
    $region2: #{tpu_custom_call.1} parent=1 // loop_pre_header
      _
    $region3: #{tpu_custom_call.1} parent=1 // loop_header
      %s14 = sphi 0, %s18
      %p15 = scmp.ge.s32.totalorder %s14, 16
    $region4: #{tpu_custom_call.1} parent=1 // loop_header_branch
      %17 = sbr.rel (%p15) target = $region8
    $region5: #{tpu_custom_call.1} parent=1 // loop_body
      %s19 = sadd.s32 %s12, %s14
      %s20 = sld [smem:[#allocation5 + %s19]]
      %s21 = smul.addr %s20, 16
      %s22 = scalar_lea.hbm %s1, %s21
      %s23 = scalar_lea.vmem [#allocation2], %s14
      // Predicated region
      $region9: #{tpu_custom_call.1} parent=5 // pred_check
        _
      $region10: #{tpu_custom_call.1} parent=5 // pred_check_branch
        %25 = sbr.rel target = $region12
      $region11: #{tpu_custom_call.1} parent=5 // pred_region
        %26 = sst [smem:[#allocation10]] [#allocation9]
        %27 = sst [smem:[#allocation11]] [#allocation8]
      $region12: #{tpu_custom_call.1} parent=5 // pred_fallthru
        _
      %29 = shalt.err (0)
      %s31 = sshll.u32 %s23, 4
      %s32 = int_to_ptr.vmem [resolvable:$true] %s31
      %34 = dma.hbm_to_vmem [thread:$0]  %s22, 16, %s32, [#allocation3]
    $region6: #{tpu_custom_call.1} parent=1 // loop_footer
      %s18 = sadd.s32 1, %s14
    $region7: #{tpu_custom_call.1} parent=1 // loop_footer_branch
      %13 = sbr.rel target = $region3
    $region8: #{tpu_custom_call.1} parent=1 // loop_exit
      _
    loop: start=0, step=1, limit=16
    $region13: #{tpu_custom_call.1} parent=1 // loop_pre_header
      _
    $region14: #{tpu_custom_call.1} parent=1 // loop_header
      %s36 = sphi 0, %s40
      %p37 = scmp.ge.s32.totalorder %s36, 16
    $region15: #{tpu_custom_call.1} parent=1 // loop_header_branch
      %39 = sbr.rel (%p37) target = $region19
    $region16: #{tpu_custom_call.1} parent=1 // loop_body
      %42 = dma.done [#allocation3], 16
    $region17: #{tpu_custom_call.1} parent=1 // loop_footer
      %s40 = sadd.s32 1, %s36
    $region18: #{tpu_custom_call.1} parent=1 // loop_footer_branch
      %35 = sbr.rel target = $region14
    $region19: #{tpu_custom_call.1} parent=1 // loop_exit
      _
    %v43 = vld [vmem:[#allocation2] sm:$0xff]
    %v44 = vld [vmem:[#allocation2 + $0x8] sm:$0xff]
    %v45 = vmul.f32 %v43, 5.656854
    %v46 = vmul.f32 %v44, 5.656854
    %47 = vst [vmem:[#allocation6] sm:$0xff] %v45
    %48 = vst [vmem:[#allocation6 + $0x8] sm:$0xff] %v46
    // Predicated region
    $region20: #{tpu_custom_call.1} parent=1 // pred_check
      _
    $region21: #{tpu_custom_call.1} parent=1 // pred_check_branch
      %50 = sbr.rel (0) target = $region23
    $region22: #{tpu_custom_call.1} parent=1 // pred_region
      %s52 = ssub.s32 256, 256
      %53 = vsyncadd [#allocation7], %s52
      %s54 = sshll.u32 [#allocation6], 4
      %s55 = int_to_ptr.vmem [resolvable:$true] %s54
      %60 = dma.vmem_to_hbm [thread:$0]  %s55, 256, %s2, [#allocation7], 128, 128, 8
    $region23: #{tpu_custom_call.1} parent=1 // pred_fallthru
      _
    // Predicated region
    $region24: #{tpu_custom_call.1} parent=1 // pred_check
      _
    $region25: #{tpu_custom_call.1} parent=1 // pred_check_branch
      %62 = sbr.rel (0) target = $region27
    $region26: #{tpu_custom_call.1} parent=1 // pred_region
      %63 = dma.done [#allocation7], 256
    $region27: #{tpu_custom_call.1} parent=1 // pred_fallthru
      _
    %64 = vsyncpa [#allocation7], 1
  %65 = vsyncmov [#allocation3]
  %s66 = vpop.sfrf %65
  %p67 = scmp.eq.s32.totalorder %s66, 0
  %p68 = pneg %p67
  %70 = shalt.err (%p68)

</llo_original>
